<compile_context>
chip_gen: v7x
topology: tpu7x:2x2x1
jax: 0.10.0
libtpu: 0.0.40
codegen_flags: <defaults>
</compile_context>

<pallas_src>
import functools
import numpy as np
import jax
import jax.numpy as jnp
from jax import lax
from jax.experimental import pallas as pl
from jax.experimental.pallas import tpu as pltpu

LANE = 128
ROW_ALIGN = 32        # sublane multiple that is layout-legal for int8/int16/int32 blocks
MAX_TILE_R = 4096     # 4096 x 128 x 4 B = 2 MiB/block; 3 streams x 2 buffers = 12 MiB VMEM
MIN_SPLIT_ROWS = 2 * ROW_ALIGN  # only split the grid when each half is a full aligned tile
VMEM_LIMIT = 32 * 1024 * 1024   # fits every generation's scoped VMEM (v7x: 64 MiB physical)


def _round_up(x, m):
    return ((x + m - 1) // m) * m


@functools.lru_cache(maxsize=None)
def _make_kernel(z_prev, z_bypass, z3, m0, lsh, rsh, qmin, qmax):
    """All requantization parameters are compile-time constants (torch reads them via .item())."""
    assert 0 < m0 < 2 ** 31, "M0 is expected to be a positive normalized multiplier"
    # numpy scalars -> jaxpr literals (NOT captured device constants).
    m_lo = np.uint32(m0 & 0xFFFF)
    m_hi = np.uint32((m0 >> 16) & 0xFFFF)
    # merged constant for a < 0: signed-high-word correction (subtract m0; M0 > 0 so the
    # other operand needs none) plus the nudge high word (-1 when the product is negative).
    neg_corr = np.uint32((m0 + 1) & 0xFFFFFFFF)
    mask16 = np.uint32(0xFFFF)

    def kernel(prev_ref, bypass_ref, out_ref):
        q1 = prev_ref[...]
        q2 = bypass_ref[...]
        if q1.dtype != jnp.int32:
            q1 = q1.astype(jnp.int32)
        if q2.dtype != jnp.int32:
            q2 = q2.astype(jnp.int32)

        # (prev - z_prev) * (bypass - z_bypass): equal mod 2^32 to the expanded torch form,
        # and only 1 vector multiply instead of 3.
        a = (q1 - z_prev) * (q2 - z_bypass)

        if lsh:
            # shift < 0 branch: pre-shift left, then requantize with shift 0.
            # TODO(synk): torch left-shifts in int64; we left-shift in int32 (exact for
            # realistic QAT ranges where the shifted value still fits in 32 bits).
            a = jnp.left_shift(a, lsh)

        # ---- multiply_M: ((int64)a * M0 + nudge) >> 31, emulated with uint32 limbs ----
        au = lax.bitcast_convert_type(a, jnp.uint32)
        a_lo = au & mask16
        a_hi = au >> 16
        ll = a_lo * m_lo
        hl = a_hi * m_lo
        lh = a_lo * m_hi
        hh = a_hi * m_hi
        cross = hl + (ll >> 16)                    # cannot overflow uint32
        cross2 = lh + (cross & mask16)             # cannot overflow uint32
        lo = (cross2 << 16) | (ll & mask16)
        hi = hh + (cross >> 16) + (cross2 >> 16)   # unsigned high word

        # sign mask of a (== sign of the product, since M0 > 0): all-ones where a < 0
        su = lax.bitcast_convert_type(a >> 31, jnp.uint32)
        hi = hi - (su & neg_corr)                  # signed hi fix + nudge high word
        nudge_lo = np.uint32(0x40000000) | (su & np.uint32(0x80000001))
        sum_lo = lo + nudge_lo
        sum_hi = hi + (sum_lo < lo).astype(jnp.uint32)
        # arithmetic >>31 of the 64-bit value; result fits in 32 bits -> take the low word
        high = lax.bitcast_convert_type((sum_hi << 1) | (sum_lo >> 31), jnp.int32)

        # ---- shifting(): gemmlowp rounding-divide-by-2^rsh, closed form ----
        if rsh > 0:
            # (high + 2^(rsh-1) - (high<0)) >> rsh  ==  remainder/threshold form
            # (exact unless high + 2^(rsh-1) wraps int32; same realistic-range assumption
            #  as the lsh path above).
            total = (high + ((1 << (rsh - 1)) + (high >> 31))) >> rsh
        else:
            total = high

        # total + z3 could in principle wrap int32 for extreme values; harmless for
        # realistic QAT ranges (clip happens after the add, as in torch).
        out_ref[...] = jnp.clip(total + z3, qmin, qmax)

    return kernel


def _choose_tile(rows):
    if rows < MIN_SPLIT_ROWS:
        return rows                                  # single full-array block (always legal)
    half = _round_up(pl.cdiv(rows, 2), ROW_ALIGN)    # guarantee grid >= 2 (v7x dual-TC split)
    return min(MAX_TILE_R, half)


def _requant_call(p2, b2, kernel):
    rows = p2.shape[0]
    tile_r = _choose_tile(rows)
    grid = pl.cdiv(rows, tile_r)
    n = rows * LANE
    return pl.pallas_call(
        kernel,
        out_shape=jax.ShapeDtypeStruct((rows, LANE), jnp.int32),
        grid_spec=pltpu.PrefetchScalarGridSpec(
            num_scalar_prefetch=0,
            grid=(grid,),
            in_specs=[pl.BlockSpec((tile_r, LANE), lambda i: (i, 0)),
                      pl.BlockSpec((tile_r, LANE), lambda i: (i, 0))],
            out_specs=pl.BlockSpec((tile_r, LANE), lambda i: (i, 0))),
        compiler_params=pltpu.CompilerParams(
            dimension_semantics=("parallel",),
            vmem_limit_bytes=VMEM_LIMIT),
        cost_estimate=pl.CostEstimate(flops=40 * n, transcendentals=0,
                                      bytes_accessed=12 * n),
    )(p2, b2)


def quantized_mul(prev, bypass, *, z_prev, z_bypass, z3, M0, shift, a_bit):
    assert prev.shape == bypass.shape
    orig_shape = prev.shape
    n = int(np.prod(orig_shape)) if len(orig_shape) else 1
    if n == 0:
        return jnp.zeros(orig_shape, jnp.int32)

    if a_bit == 4:
        qmin, qmax = 0, 15
    elif a_bit == 8:
        qmin, qmax = -128, 127
    elif a_bit == 16:
        qmin, qmax = -32768, 32767
    else:
        qmin, qmax = -2147483648, 2147483647

    # torch branches on `self.shift < 0` and uses `.item()`, so shift is static here too.
    lsh = max(-int(shift), 0)
    rsh = max(int(shift), 0)
    kernel = _make_kernel(int(z_prev), int(z_bypass), int(z3), int(M0),
                          lsh, rsh, qmin, qmax)

    p = jnp.asarray(prev).reshape(-1)
    b = jnp.asarray(bypass).reshape(-1)
    # TODO(synk): keep narrow (int8/int16) inputs native instead of widening; the kernel
    # already widens internally, only the block row-alignment would need to change.
    if p.dtype != jnp.int32:
        p = p.astype(jnp.int32)
    if b.dtype != jnp.int32:
        b = b.astype(jnp.int32)

    rem = n % LANE
    if rem == 0:
        rows = n // LANE
        out = _requant_call(p.reshape(rows, LANE), b.reshape(rows, LANE), kernel)
        return out.reshape(orig_shape)

    # Ragged path: copy-free aligned prefix + tiny padded tail call (<= 508 B of padding),
    # instead of jnp.pad-ing (re-copying) both full inputs through HBM.
    n_main = n - rem
    rows = n_main // LANE
    parts = []
    if rows > 0:
        out_main = _requant_call(p[:n_main].reshape(rows, LANE),
                                 b[:n_main].reshape(rows, LANE), kernel)
        parts.append(out_main.reshape(-1))
    pt = jnp.pad(p[n_main:], (0, LANE - rem)).reshape(1, LANE)
    bt = jnp.pad(b[n_main:], (0, LANE - rem)).reshape(1, LANE)
    out_tail = _requant_call(pt, bt, kernel).reshape(-1)[:rem]
    parts.append(out_tail)
    out = parts[0] if len(parts) == 1 else jnp.concatenate(parts)
    return out.reshape(orig_shape)


def _numpy_ref(prev, bypass, z_prev, z_bypass, z3, M0, shift, a_bit):
    p = prev.astype(np.int64)
    b = bypass.astype(np.int64)
    m = p * b - p * z_bypass - b * z_prev + z_prev * z_bypass
    if shift < 0:
        a = m << (-shift)
        rsh = 0
    else:
        a = m
        rsh = shift
    prod = a * np.int64(M0)
    nudge = np.where(prod >= 0, 1 << 30, 1 - (1 << 30)).astype(np.int64)
    high = (prod + nudge) >> 31
    if rsh > 0:
        mask = (1 << rsh) - 1
        remainder = high & mask
        threshold = (mask >> 1) + (high < 0).astype(np.int64)
        total = (high >> rsh) + (remainder > threshold).astype(np.int64)
    else:
        total = high
    total = total + z3
    bounds = {4: (0, 15), 8: (-128, 127), 16: (-32768, 32767),
              32: (-2147483648, 2147483647)}[a_bit]
    return np.clip(total, bounds[0], bounds[1])


def _run_case(name, shape, key, lo, hi, *, z_prev, z_bypass, z3, M0, shift, a_bit):
    k1, k2 = jax.random.split(key)
    prev = jax.random.randint(k1, shape, lo, hi, dtype=jnp.int32)
    bypass = jax.random.randint(k2, shape, lo, hi, dtype=jnp.int32)
    out = quantized_mul(prev, bypass, z_prev=z_prev, z_bypass=z_bypass, z3=z3,
                        M0=M0, shift=shift, a_bit=a_bit)
    out = jax.block_until_ready(out)
    ref = _numpy_ref(np.asarray(prev), np.asarray(bypass),
                     z_prev, z_bypass, z3, M0, shift, a_bit)
    assert np.array_equal(np.asarray(out), ref.astype(np.int32)), \
        f"mismatch vs int64 reference: {name}"


if __name__ == "__main__":
    key = jax.random.PRNGKey(0)
    k0, k1, k2, k3 = jax.random.split(key, 4)

    # Primary small NCHW case: 8-bit activations, positive shift (single full block).
    _run_case("a8_shift_pos", (2, 4, 16, 16), k0, -128, 128,
              z_prev=2, z_bypass=-3, z3=1, M0=1518500250, shift=7, a_bit=8)

    # shift < 0 branch (left pre-shift) + unsigned 4-bit clamp.
    _run_case("a4_shift_neg", (2, 4, 16, 16), k1, 0, 16,
              z_prev=3, z_bypass=5, z3=2, M0=1840700270, shift=-2, a_bit=4)

    # Element count not a multiple of 128: exercises the aligned-prefix + padded-tail path.
    _run_case("a8_odd_shape", (3, 5, 7, 9), k2, -128, 128,
              z_prev=-1, z_bypass=4, z3=0, M0=1625000000, shift=6, a_bit=8)

    # Larger case: rows=1536 -> tile_r=768, grid=2 ("parallel" axis splits across cores),
    # using the copy-free 128-divisible wrapper path.
    _run_case("a8_big", (2, 8, 96, 128), k3, -128, 128,
              z_prev=-7, z_bypass=11, z3=-4, M0=1273556807, shift=9, a_bit=8)

    print("KERNEL_OK")
</pallas_src>

<mosaic_0001>
module attributes {stable_mosaic.version = 11 : i64} {
  func.func @kernel(%arg0: i32, %arg1: memref<16x128xi32, #tpu.memory_space<vmem>>, %arg2: memref<16x128xi32, #tpu.memory_space<vmem>>, %arg3: memref<16x128xi32, #tpu.memory_space<vmem>>) attributes {dimension_semantics = [#tpu.dimension_semantics<parallel>], iteration_bounds = array<i64: 1>, scalar_prefetch = 0 : i64, scratch_operands = 0 : i64, tpu.core_type = #tpu.core_type<tc>, window_params = [{transform_indices = @transform_0, window_bounds = array<i64: 16, 128>}, {transform_indices = @transform_1, window_bounds = array<i64: 16, 128>}, {transform_indices = @transform_2, window_bounds = array<i64: 16, 128>}]} {
    %c0 = arith.constant 0 : index
    %c0_0 = arith.constant 0 : index
    %0 = vector.load %arg1[%c0, %c0_0] : memref<16x128xi32, #tpu.memory_space<vmem>>, vector<16x128xi32>
    %c0_1 = arith.constant 0 : index
    %c0_2 = arith.constant 0 : index
    %1 = vector.load %arg2[%c0_1, %c0_2] : memref<16x128xi32, #tpu.memory_space<vmem>>, vector<16x128xi32>
    %c2_i32 = arith.constant 2 : i32
    %2 = vector.broadcast %c2_i32 : i32 to vector<16x128xi32>
    %3 = arith.subi %0, %2 : vector<16x128xi32>
    %c-3_i32 = arith.constant -3 : i32
    %4 = vector.broadcast %c-3_i32 : i32 to vector<16x128xi32>
    %5 = arith.subi %1, %4 : vector<16x128xi32>
    %6 = arith.muli %3, %5 : vector<16x128xi32>
    %7 = tpu.bitcast %6 : vector<16x128xi32> -> vector<16x128xi32>
    %c65535_i32 = arith.constant 65535 : i32
    %8 = vector.broadcast %c65535_i32 : i32 to vector<16x128xi32>
    %9 = arith.andi %7, %8 : vector<16x128xi32>
    %c16_i32 = arith.constant 16 : i32
    %10 = vector.broadcast %c16_i32 : i32 to vector<16x128xi32>
    %11 = arith.shrui %7, %10 : vector<16x128xi32>
    %c31130_i32 = arith.constant 31130 : i32
    %12 = vector.broadcast %c31130_i32 : i32 to vector<16x128xi32>
    %13 = arith.muli %9, %12 : vector<16x128xi32>
    %c31130_i32_3 = arith.constant 31130 : i32
    %14 = vector.broadcast %c31130_i32_3 : i32 to vector<16x128xi32>
    %15 = arith.muli %11, %14 : vector<16x128xi32>
    %c23170_i32 = arith.constant 23170 : i32
    %16 = vector.broadcast %c23170_i32 : i32 to vector<16x128xi32>
    %17 = arith.muli %9, %16 : vector<16x128xi32>
    %c23170_i32_4 = arith.constant 23170 : i32
    %18 = vector.broadcast %c23170_i32_4 : i32 to vector<16x128xi32>
    %19 = arith.muli %11, %18 : vector<16x128xi32>
    %c16_i32_5 = arith.constant 16 : i32
    %20 = vector.broadcast %c16_i32_5 : i32 to vector<16x128xi32>
    %21 = arith.shrui %13, %20 : vector<16x128xi32>
    %22 = arith.addi %15, %21 : vector<16x128xi32>
    %c65535_i32_6 = arith.constant 65535 : i32
    %23 = vector.broadcast %c65535_i32_6 : i32 to vector<16x128xi32>
    %24 = arith.andi %22, %23 : vector<16x128xi32>
    %25 = arith.addi %17, %24 : vector<16x128xi32>
    %c16_i32_7 = arith.constant 16 : i32
    %26 = vector.broadcast %c16_i32_7 : i32 to vector<16x128xi32>
    %27 = arith.shli %25, %26 : vector<16x128xi32>
    %c65535_i32_8 = arith.constant 65535 : i32
    %28 = vector.broadcast %c65535_i32_8 : i32 to vector<16x128xi32>
    %29 = arith.andi %13, %28 : vector<16x128xi32>
    %30 = arith.ori %27, %29 : vector<16x128xi32>
    %c16_i32_9 = arith.constant 16 : i32
    %31 = vector.broadcast %c16_i32_9 : i32 to vector<16x128xi32>
    %32 = arith.shrui %22, %31 : vector<16x128xi32>
    %33 = arith.addi %19, %32 : vector<16x128xi32>
    %c16_i32_10 = arith.constant 16 : i32
    %34 = vector.broadcast %c16_i32_10 : i32 to vector<16x128xi32>
    %35 = arith.shrui %25, %34 : vector<16x128xi32>
    %36 = arith.addi %33, %35 : vector<16x128xi32>
    %c31_i32 = arith.constant 31 : i32
    %37 = vector.broadcast %c31_i32 : i32 to vector<16x128xi32>
    %38 = arith.shrsi %6, %37 : vector<16x128xi32>
    %39 = tpu.bitcast %38 : vector<16x128xi32> -> vector<16x128xi32>
    %c1518500251_i32 = arith.constant 1518500251 : i32
    %40 = vector.broadcast %c1518500251_i32 : i32 to vector<16x128xi32>
    %41 = arith.andi %39, %40 : vector<16x128xi32>
    %42 = arith.subi %36, %41 : vector<16x128xi32>
    %c-2147483647_i32 = arith.constant -2147483647 : i32
    %43 = vector.broadcast %c-2147483647_i32 : i32 to vector<16x128xi32>
    %44 = arith.andi %39, %43 : vector<16x128xi32>
    %c1073741824_i32 = arith.constant 1073741824 : i32
    %45 = vector.broadcast %c1073741824_i32 : i32 to vector<16x128xi32>
    %46 = arith.ori %45, %44 : vector<16x128xi32>
    %47 = arith.addi %30, %46 : vector<16x128xi32>
    %48 = arith.cmpi ult, %47, %30 : vector<16x128xi32>
    %49 = arith.extui %48 : vector<16x128xi1> to vector<16x128xi32>
    %50 = arith.addi %42, %49 : vector<16x128xi32>
    %c1_i32 = arith.constant 1 : i32
    %51 = vector.broadcast %c1_i32 : i32 to vector<16x128xi32>
    %52 = arith.shli %50, %51 : vector<16x128xi32>
    %c31_i32_11 = arith.constant 31 : i32
    %53 = vector.broadcast %c31_i32_11 : i32 to vector<16x128xi32>
    %54 = arith.shrui %47, %53 : vector<16x128xi32>
    %55 = arith.ori %52, %54 : vector<16x128xi32>
    %56 = tpu.bitcast %55 : vector<16x128xi32> -> vector<16x128xi32>
    %c31_i32_12 = arith.constant 31 : i32
    %57 = vector.broadcast %c31_i32_12 : i32 to vector<16x128xi32>
    %58 = arith.shrsi %56, %57 : vector<16x128xi32>
    %c64_i32 = arith.constant 64 : i32
    %59 = vector.broadcast %c64_i32 : i32 to vector<16x128xi32>
    %60 = arith.addi %59, %58 : vector<16x128xi32>
    %61 = arith.addi %56, %60 : vector<16x128xi32>
    %c7_i32 = arith.constant 7 : i32
    %62 = vector.broadcast %c7_i32 : i32 to vector<16x128xi32>
    %63 = arith.shrsi %61, %62 : vector<16x128xi32>
    %c1_i32_13 = arith.constant 1 : i32
    %64 = vector.broadcast %c1_i32_13 : i32 to vector<16x128xi32>
    %65 = arith.addi %63, %64 : vector<16x128xi32>
    %c-128_i32 = arith.constant -128 : i32
    %c127_i32 = arith.constant 127 : i32
    %66 = vector.broadcast %c-128_i32 : i32 to vector<16x128xi32>
    %67 = arith.maxsi %66, %65 : vector<16x128xi32>
    %68 = vector.broadcast %c127_i32 : i32 to vector<16x128xi32>
    %69 = arith.minsi %68, %67 : vector<16x128xi32>
    %c0_14 = arith.constant 0 : index
    %c0_15 = arith.constant 0 : index
    %70 = vector.load %arg3[%c0_14, %c0_15] : memref<16x128xi32, #tpu.memory_space<vmem>>, vector<16x128xi32>
    tpu.vector_store %arg3[%c0_14, %c0_15], %69 {strides = array<i32>} : memref<16x128xi32, #tpu.memory_space<vmem>>, vector<16x128xi32>,
    return
  }
  func.func @transform_0(%arg0: i32) -> (i32, i32) {
    %c0_i32 = arith.constant 0 : i32
    %c0_i32_0 = arith.constant 0 : i32
    return %arg0, %c0_i32 : i32, i32
  }
  func.func @transform_1(%arg0: i32) -> (i32, i32) {
    %c0_i32 = arith.constant 0 : i32
    %c0_i32_0 = arith.constant 0 : i32
    return %arg0, %c0_i32 : i32, i32
  }
  func.func @transform_2(%arg0: i32) -> (i32, i32) {
    %c0_i32 = arith.constant 0 : i32
    %c0_i32_0 = arith.constant 0 : i32
    return %arg0, %c0_i32 : i32, i32
  }
}

</mosaic_0001>

<llo_original>
// kernel: tpu_custom_call.1
$region0: #{tpu_custom_call.1}
  #allocation0 [shape = 'u32[]', space=smem, size = 0x4, offset = 0x4, fixed_abs, tag = 'smem constant byte address 0x4 - core index']
  #allocation1 [shape = 'u32[144,128]{1,0:T(1,128)}', space=vmem, size = 0x12000, scoped, tag = 'internal scratch']
  %s0 = inlined_call_operand.hbm [shape: s32[16,128], index: 0, kind: input, shape index: {}]
  %s1 = inlined_call_operand.hbm [shape: s32[16,128], index: 1, kind: input, shape index: {}]
  %s2 = inlined_call_operand.hbm [shape: s32[16,128], index: 2, kind: output, shape index: {}]
  %s3 = sld [smem:[#allocation0]]
  $region26: #{tpu_custom_call.1} parent=0
    _
  %s5 = ssub.s32 1, %s3
  %s6 = scalar_select 0, %s5, %s3
  $region1: #{tpu_custom_call.1} parent=0
    #allocation2 [shape = 'u8[8192]{0}', space=vmem, size = 0x2000, scoped, tag = 'input window, operand 0, single buffered']
    #allocation3 [shape = 's32[1]{0}', space=sflag, size = 0x4, scoped, tag = 'scoped memory for tpu_custom_call.1']
    #allocation4 [shape = 's32[1]{0}', space=sflag, size = 0x4, scoped, tag = 'scoped memory for tpu_custom_call.1']
    #allocation5 [shape = 'u8[8192]{0}', space=vmem, size = 0x2000, scoped, tag = 'input window, operand 1, single buffered']
    #allocation6 [shape = 's32[1]{0}', space=sflag, size = 0x4, scoped, tag = 'scoped memory for tpu_custom_call.1']
    #allocation7 [shape = 'u8[8192]{0}', space=vmem, size = 0x2000, scoped, tag = 'output window, operand 0, single buffered']
    %7 = vsyncpa [#allocation3], 0
    %8 = vsyncpa [#allocation6], 0
    %9 = vsyncpa [#allocation4], 0
    // Predicated region
    $region2: #{tpu_custom_call.1} parent=1 // pred_check
      _
    $region3: #{tpu_custom_call.1} parent=1 // pred_check_branch
      %11 = sbr.rel (0) target = $region5
    $region4: #{tpu_custom_call.1} parent=1 // pred_region
      %s13 = ssub.s32 256, 256
      %14 = vsyncadd [#allocation3], %s13
      %s15 = sshll.u32 [#allocation2], 4
      %s16 = int_to_ptr.vmem [resolvable:$true] %s15
      %21 = dma.hbm_to_vmem [thread:$0]  %s0, 256, %s16, [#allocation3], 128, 128, 8
    $region5: #{tpu_custom_call.1} parent=1 // pred_fallthru
      _
    // Predicated region
    $region6: #{tpu_custom_call.1} parent=1 // pred_check
      _
    $region7: #{tpu_custom_call.1} parent=1 // pred_check_branch
      %23 = sbr.rel (0) target = $region9
    $region8: #{tpu_custom_call.1} parent=1 // pred_region
      %s25 = ssub.s32 256, 256
      %26 = vsyncadd [#allocation6], %s25
      %s27 = sshll.u32 [#allocation5], 4
      %s28 = int_to_ptr.vmem [resolvable:$true] %s27
      %33 = dma.hbm_to_vmem [thread:$0]  %s1, 256, %s28, [#allocation6], 128, 128, 8
    $region9: #{tpu_custom_call.1} parent=1 // pred_fallthru
      _
    // Predicated region
    $region10: #{tpu_custom_call.1} parent=1 // pred_check
      _
    $region11: #{tpu_custom_call.1} parent=1 // pred_check_branch
      %35 = sbr.rel (0) target = $region13
    $region12: #{tpu_custom_call.1} parent=1 // pred_region
      %36 = dma.done [#allocation3], 256
    $region13: #{tpu_custom_call.1} parent=1 // pred_fallthru
      _
    // Predicated region
    $region14: #{tpu_custom_call.1} parent=1 // pred_check
      _
    $region15: #{tpu_custom_call.1} parent=1 // pred_check_branch
      %38 = sbr.rel (0) target = $region17
    $region16: #{tpu_custom_call.1} parent=1 // pred_region
      %39 = dma.done [#allocation6], 256
    $region17: #{tpu_custom_call.1} parent=1 // pred_fallthru
      _
    %v40 = vld [vmem:[#allocation2] sm:$0xff]
    %v41 = vld [vmem:[#allocation2 + $0x8] sm:$0xff]
    %v42 = vld [vmem:[#allocation5] sm:$0xff]
    %v43 = vld [vmem:[#allocation5 + $0x8] sm:$0xff]
    %v44 = vsub.s32 %v40, 2
    %v45 = vsub.s32 %v41, 2
    %v46 = vsub.s32 %v42, 4294967293
    %v47 = vsub.s32 %v43, 4294967293
    %v48 = vmul.u32 %v44, %v46
    %v49 = vmul.u32 %v45, %v47
    %v50 = vand.u32 %v48, 65535
    %v51 = vand.u32 %v49, 65535
    %v52 = vshrl.u32 %v48, 16
    %v53 = vshrl.u32 %v49, 16
    %v54 = vmul.u32 %v50, 31130
    %v55 = vmul.u32 %v51, 31130
    %v56 = vmul.u32 %v52, 31130
    %v57 = vmul.u32 %v53, 31130
    %v58 = vmul.u32 %v50, 23170
    %v59 = vmul.u32 %v51, 23170
    %v60 = vmul.u32 %v52, 23170
    %v61 = vmul.u32 %v53, 23170
    %v62 = vshrl.u32 %v54, 16
    %v63 = vshrl.u32 %v55, 16
    %v64 = vadd.s32 %v56, %v62
    %v65 = vadd.s32 %v57, %v63
    %v66 = vand.u32 %v64, 65535
    %v67 = vand.u32 %v65, 65535
    %v68 = vadd.s32 %v58, %v66
    %v69 = vadd.s32 %v59, %v67
    %v70 = vshll.u32 %v68, 16
    %v71 = vshll.u32 %v69, 16
    %v72 = vand.u32 %v54, 65535
    %v73 = vand.u32 %v55, 65535
    %v74 = vor.u32 %v70, %v72
    %v75 = vor.u32 %v71, %v73
    %v76 = vshrl.u32 %v64, 16
    %v77 = vshrl.u32 %v65, 16
    %v78 = vadd.s32 %v60, %v76
    %v79 = vadd.s32 %v61, %v77
    %v80 = vshrl.u32 %v68, 16
    %v81 = vshrl.u32 %v69, 16
    %v82 = vadd.s32 %v78, %v80
    %v83 = vadd.s32 %v79, %v81
    %v84 = vshra.s32 %v48, 31
    %v85 = vshra.s32 %v49, 31
    %v86 = vand.u32 %v84, 1518500251
    %v87 = vand.u32 %v85, 1518500251
    %v88 = vsub.s32 %v82, %v86
    %v89 = vsub.s32 %v83, %v87
    %v90 = vand.u32 %v84, 2147483649
    %v91 = vand.u32 %v85, 2147483649
    %v92 = vor.u32 %v90, 1073741824
    %v93 = vor.u32 %v91, 1073741824
    %v94 = vadd.s32 %v74, %v92
    %v95 = vadd.s32 %v75, %v93
    %vm96 = vcmp.lt.u32.totalorder %v94, %v74
    %vm97 = vcmp.lt.u32.totalorder %v95, %v75
    %v98 = vsel %vm96, 1, 0
    %v99 = vsel %vm97, 1, 0
    %v100 = vadd.s32 %v88, %v98
    %v101 = vadd.s32 %v89, %v99
    %v102 = vshll.u32 %v100, 1
    %v103 = vshll.u32 %v101, 1
    %v104 = vshrl.u32 %v94, 31
    %v105 = vshrl.u32 %v95, 31
    %v106 = vor.u32 %v102, %v104
    %v107 = vor.u32 %v103, %v105
    %v108 = vshra.s32 %v106, 31
    %v109 = vshra.s32 %v107, 31
    %v110 = vadd.s32 %v108, 64
    %v111 = vadd.s32 %v109, 64
    %v112 = vadd.s32 %v106, %v110
    %v113 = vadd.s32 %v107, %v111
    %v114 = vshra.s32 %v112, 7
    %v115 = vshra.s32 %v113, 7
    %v116 = vadd.s32 %v114, 1
    %v117 = vadd.s32 %v115, 1
    %vm118 = vcmp.gt.s32.totalorder %v116, 4294967168
    %v119 = vsel %vm118, %v116, 4294967168
    %vm120 = vcmp.gt.s32.totalorder %v117, 4294967168
    %v121 = vsel %vm120, %v117, 4294967168
    %vm122 = vcmp.lt.s32.totalorder %v119, 127
    %v123 = vsel %vm122, %v119, 127
    %vm124 = vcmp.lt.s32.totalorder %v121, 127
    %v125 = vsel %vm124, %v121, 127
    %126 = vst [vmem:[#allocation7] sm:$0xff] %v123
    %127 = vst [vmem:[#allocation7 + $0x8] sm:$0xff] %v125
    // Predicated region
    $region18: #{tpu_custom_call.1} parent=1 // pred_check
      _
    $region19: #{tpu_custom_call.1} parent=1 // pred_check_branch
      %129 = sbr.rel (0) target = $region21
    $region20: #{tpu_custom_call.1} parent=1 // pred_region
      %s131 = ssub.s32 256, 256
      %132 = vsyncadd [#allocation4], %s131
      %s133 = sshll.u32 [#allocation7], 4
      %s134 = int_to_ptr.vmem [resolvable:$true] %s133
      %139 = dma.vmem_to_hbm [thread:$0]  %s134, 256, %s2, [#allocation4], 128, 128, 8
    $region21: #{tpu_custom_call.1} parent=1 // pred_fallthru
      _
    // Predicated region
    $region22: #{tpu_custom_call.1} parent=1 // pred_check
      _
    $region23: #{tpu_custom_call.1} parent=1 // pred_check_branch
      %141 = sbr.rel (0) target = $region25
    $region24: #{tpu_custom_call.1} parent=1 // pred_region
      %142 = dma.done [#allocation4], 256
    $region25: #{tpu_custom_call.1} parent=1 // pred_fallthru
      _
    %143 = vsyncpa [#allocation3], 1
    %144 = vsyncpa [#allocation6], 1
    %145 = vsyncpa [#allocation4], 1

</llo_original>
